<compile_context>
chip_gen: v6e
topology: v6e:2x2x1
jax: 0.10.0
libtpu: 0.0.40
codegen_flags: <defaults>
</compile_context>

<pallas_src>
import functools
import math

import jax
import jax.numpy as jnp
from jax import lax
from jax.experimental import pallas as pl
from jax.experimental.pallas import tpu as pltpu

_LANE = 128


def _cdiv(a, b):
    return -(-a // b)


def _round_up(a, b):
    return _cdiv(a, b) * b


def _sublane_multiple(dtype):
    # Rows per vreg for packed dtypes: f32 -> 8, bf16 -> 16, int8/bool -> 32.
    return 8 * max(1, 4 // jnp.dtype(dtype).itemsize)


def _tpu_config():
    """(num_tensorcores, max_tile_rows, vmem_limit_bytes) per TPU generation."""
    gen = None
    try:
        kind = jax.devices()[0].device_kind.lower()
        for g in (7, 6, 5, 4):
            if ("v%d" % g) in kind or ("tpu%d" % g) in kind:
                gen = g
                break
    except Exception:  # pragma: no cover - CPU/interpret fallback
        gen = None
    if gen is not None and gen >= 7:
        # v7x: 2 TCs/chip, ~3.2 TB/s HBM -> big blocks to amortize the
        # ~0.35us/step overhead; 24 MiB of double-buffered inputs, raise the
        # scoped-VMEM limit for cast-temporary headroom (64 MiB physical).
        return 2, 8192, 48 << 20
    if gen == 6:
        # v6e: single TC; 12 MiB double-buffered fits the 32 MiB default.
        return 1, 4096, None
    # v5e (and unknown): single TC, 16 MiB scoped-VMEM default -> stay small.
    return 1, 2048, None


def _masked_mse_kernel(x_ref, t_ref, m_ref, num_ref, den_ref, *, valid_rows):
    c = pl.program_id(0)             # TensorCore split axis ("parallel")
    i = pl.program_id(1)             # streaming reduction axis ("arbitrary")
    nb = pl.num_programs(1)

    # Output blocks are resident across the reduction axis (index_map ignores
    # i): zero them once per core, accumulate directly into them.
    @pl.when(i == 0)
    def _():
        num_ref[...] = jnp.zeros_like(num_ref)
        den_ref[...] = jnp.zeros_like(den_ref)

    # TODO(synk): for bf16/fp8 inputs, verify via pl.lower_as_mlir that these
    # casts fuse per-vreg rather than materializing f32 temporaries in VMEM.
    x = x_ref[...].astype(jnp.float32)
    t = t_ref[...].astype(jnp.float32)
    m = m_ref[...].astype(jnp.float32)
    d = x - t
    sq = d * d * m

    tile_rows = x_ref.shape[0]
    blk = c * nb + i                             # logical (un-clamped) block
    # Fast path for interior blocks; masked path only when this block can
    # contain rows at/after the logical end of the data (partial last block,
    # or a redundant clamp-replayed block on the core-split axis).
    needs_mask = (blk + 1) * tile_rows > valid_rows

    def _fold(v):
        # (tile_rows, 128) -> (1, 8, 128): vreg-aligned VPU adds only.
        return v.reshape(1, -1, 8, _LANE).sum(axis=1)

    @pl.when(jnp.logical_not(needs_mask))
    def _():
        num_ref[...] += _fold(sq)
        den_ref[...] += _fold(m)

    @pl.when(needs_mask)
    def _():
        # Pallas does not zero-fill out-of-bounds rows of a partial block, so
        # x/t can hold arbitrary bits (Inf/NaN) there.  Mask the contribution
        # itself (select never propagates NaN from the untaken branch).
        row_ids = blk * tile_rows + lax.broadcasted_iota(jnp.int32, x.shape, 0)
        valid = row_ids < valid_rows
        num_ref[...] += _fold(jnp.where(valid, sq, 0.0))
        den_ref[...] += _fold(jnp.where(valid, m, 0.0))


def masked_mse_loss(inputs, target, mask, *, _max_tile_rows=None):
    """Pallas-backed masked MSE loss (scalar float32)."""
    assert inputs.shape == target.shape, "input/target shapes must match"

    # PyTorch behavior: slice mask batch if it is larger than the input batch.
    if inputs.shape[0] < mask.shape[0]:
        mask = mask[: inputs.shape[0]]

    denom_override = None
    if mask.shape != inputs.shape:
        # PyTorch sums the *un-broadcast* mask for the denominator.
        denom_override = jnp.sum(mask.astype(jnp.float32))
        mask = jnp.broadcast_to(mask, inputs.shape)  # rare path: one extra pass

    n = math.prod(inputs.shape)
    xf = inputs.reshape(-1)
    tf = target.reshape(-1)
    mf = mask.reshape(-1)

    sub = max(_sublane_multiple(xf.dtype), _sublane_multiple(tf.dtype),
              _sublane_multiple(mf.dtype))
    align = sub * _LANE                      # vreg-aligned prefix granule
    rows = (n // align) * sub                # rows handled by the kernel
    prefix = rows * _LANE

    # Tiny unaligned tail (< sub*128 elements): plain XLA, no jnp.pad pass.
    if prefix < n:
        xd = xf[prefix:].astype(jnp.float32)
        td = tf[prefix:].astype(jnp.float32)
        md = mf[prefix:].astype(jnp.float32)
        dd = xd - td
        tail_num = jnp.sum(dd * dd * md)
        tail_den = jnp.sum(md)
    else:
        tail_num = jnp.float32(0.0)
        tail_den = jnp.float32(0.0)

    if rows == 0:
        num = tail_num
        den = tail_den if denom_override is None else denom_override
        return num / (den + 1e-5)

    if prefix < n:
        x2 = xf[:prefix].reshape(rows, _LANE)
        t2 = tf[:prefix].reshape(rows, _LANE)
        m2 = mf[:prefix].reshape(rows, _LANE)
    else:
        x2 = xf.reshape(rows, _LANE)
        t2 = tf.reshape(rows, _LANE)
        m2 = mf.reshape(rows, _LANE)

    ncores, max_rows_cfg, vmem_limit = _tpu_config()
    if _max_tile_rows is not None:           # test hook / manual override
        max_rows_cfg = _max_tile_rows

    # rows is a multiple of `sub`, so tile_rows <= rows always holds.
    tile_rows = _round_up(
        min(max_rows_cfg, _round_up(_cdiv(rows, ncores), sub)), sub)
    total_blocks = _cdiv(rows, tile_rows)
    nb = _cdiv(total_blocks, ncores)

    def in_map(c, i):
        # Clamp logical blocks that fall past the end of the array; their
        # contribution is zeroed by the in-kernel row-validity mask.
        return (jnp.minimum(c * nb + i, total_blocks - 1), 0)

    # TODO(synk): if profiling on v7x still shows exposed DMA, add
    # pipeline_mode=pl.Buffered(3) here (and raise vmem_limit accordingly).
    in_spec = pl.BlockSpec((tile_rows, _LANE), in_map)
    out_spec = pl.BlockSpec((1, 8, _LANE), lambda c, i: (c, 0, 0))

    cp_kwargs = dict(dimension_semantics=("parallel", "arbitrary"))
    if vmem_limit is not None:
        cp_kwargs["vmem_limit_bytes"] = vmem_limit

    kernel = functools.partial(_masked_mse_kernel, valid_rows=rows)

    num_out, den_out = pl.pallas_call(
        kernel,
        out_shape=(jax.ShapeDtypeStruct((ncores, 8, _LANE), jnp.float32),
                   jax.ShapeDtypeStruct((ncores, 8, _LANE), jnp.float32)),
        grid_spec=pltpu.PrefetchScalarGridSpec(
            num_scalar_prefetch=0,
            grid=(ncores, nb),
            in_specs=[in_spec, in_spec, in_spec],
            out_specs=[out_spec, out_spec],
        ),
        compiler_params=pltpu.CompilerParams(**cp_kwargs),
    )(x2, t2, m2)

    num = jnp.sum(num_out) + tail_num
    if denom_override is None:
        den = jnp.sum(den_out) + tail_den
    else:
        den = denom_override
    return num / (den + 1e-5)


def _reference(inputs, target, mask):
    if inputs.shape[0] < mask.shape[0]:
        mask = mask[: inputs.shape[0]]
    mse = (inputs.astype(jnp.float32) - target.astype(jnp.float32)) ** 2
    mse = mse * mask.astype(jnp.float32)
    return jnp.sum(mse) / (jnp.sum(mask.astype(jnp.float32)) + 1e-5)


if __name__ == "__main__":
    key = jax.random.PRNGKey(0)
    k1, k2, k3, k4, k5, k6 = jax.random.split(key, 6)

    # Test 1: f32 NCHW, vreg-aligned numel, mask batch larger than input batch.
    B, C, H, W = 2, 4, 16, 16
    MB = 3
    x = jax.random.normal(k1, (B, C, H, W), dtype=jnp.float32)
    t = jax.random.normal(k2, (B, C, H, W), dtype=jnp.float32)
    mask = (jax.random.uniform(k3, (MB, C, H, W)) > 0.5).astype(jnp.float32)
    loss = masked_mse_loss(x, t, mask)
    jax.block_until_ready(loss)
    ref = _reference(x, t, mask)
    assert jnp.allclose(loss, ref, rtol=1e-5, atol=1e-6), (loss, ref)

    # Test 2: bf16 inputs, unaligned numel (XLA tail path) and a forced small
    # tile so the in-kernel partial-block masking path is exercised.
    B2, C2, H2, W2 = 2, 4, 25, 31       # numel = 6200 -> 48 kernel rows + 56 tail
    x2 = jax.random.normal(k4, (B2, C2, H2, W2), dtype=jnp.bfloat16)
    t2 = jax.random.normal(k5, (B2, C2, H2, W2), dtype=jnp.bfloat16)
    m2 = (jax.random.uniform(k6, (B2, C2, H2, W2)) > 0.3).astype(jnp.float32)
    loss2 = masked_mse_loss(x2, t2, m2, _max_tile_rows=32)
    jax.block_until_ready(loss2)
    ref2 = _reference(x2, t2, m2)
    assert jnp.allclose(loss2, ref2, rtol=1e-4, atol=1e-6), (loss2, ref2)

    print("KERNEL_OK")
</pallas_src>

<mosaic_0001>
module attributes {stable_mosaic.version = 11 : i64} {
  func.func @_masked_mse_kernel(%arg0: i32, %arg1: i32, %arg2: memref<16x128xf32, #tpu.memory_space<vmem>>, %arg3: memref<16x128xf32, #tpu.memory_space<vmem>>, %arg4: memref<16x128xf32, #tpu.memory_space<vmem>>, %arg5: memref<1x8x128xf32, #tpu.memory_space<vmem>>, %arg6: memref<1x8x128xf32, #tpu.memory_space<vmem>>) attributes {dimension_semantics = [#tpu.dimension_semantics<parallel>, #tpu.dimension_semantics<arbitrary>], iteration_bounds = array<i64: 1, 1>, scalar_prefetch = 0 : i64, scratch_operands = 0 : i64, tpu.core_type = #tpu.core_type<tc>, window_params = [{transform_indices = @transform_0, window_bounds = array<i64: 16, 128>}, {transform_indices = @transform_1, window_bounds = array<i64: 16, 128>}, {transform_indices = @transform_2, window_bounds = array<i64: 16, 128>}, {transform_indices = @transform_3, window_bounds = array<i64: 1, 8, 128>}, {transform_indices = @transform_4, window_bounds = array<i64: 1, 8, 128>}]} {
    %c0_i32 = arith.constant 0 : i32
    %0 = arith.cmpi eq, %arg1, %c0_i32 : i32
    %1 = arith.extui %0 : i1 to i32
    %c0_i32_0 = arith.constant 0 : i32
    %2 = arith.cmpi ne, %1, %c0_i32_0 : i32
    scf.if %2 {
      %cst = arith.constant 0.000000e+00 : f32
      %19 = vector.broadcast %cst : f32 to vector<1x8x128xf32>
      %c0_10 = arith.constant 0 : index
      %c0_11 = arith.constant 0 : index
      %c0_12 = arith.constant 0 : index
      %20 = vector.load %arg5[%c0_10, %c0_11, %c0_12] : memref<1x8x128xf32, #tpu.memory_space<vmem>>, vector<1x8x128xf32>
      tpu.vector_store %arg5[%c0_10, %c0_11, %c0_12], %19 {strides = array<i32>} : memref<1x8x128xf32, #tpu.memory_space<vmem>>, vector<1x8x128xf32>,
      %cst_13 = arith.constant 0.000000e+00 : f32
      %21 = vector.broadcast %cst_13 : f32 to vector<1x8x128xf32>
      %c0_14 = arith.constant 0 : index
      %c0_15 = arith.constant 0 : index
      %c0_16 = arith.constant 0 : index
      %22 = vector.load %arg6[%c0_14, %c0_15, %c0_16] : memref<1x8x128xf32, #tpu.memory_space<vmem>>, vector<1x8x128xf32>
      tpu.vector_store %arg6[%c0_14, %c0_15, %c0_16], %21 {strides = array<i32>} : memref<1x8x128xf32, #tpu.memory_space<vmem>>, vector<1x8x128xf32>,
    } else {
    }
    %c0 = arith.constant 0 : index
    %c0_1 = arith.constant 0 : index
    %3 = vector.load %arg2[%c0, %c0_1] : memref<16x128xf32, #tpu.memory_space<vmem>>, vector<16x128xf32>
    %c0_2 = arith.constant 0 : index
    %c0_3 = arith.constant 0 : index
    %4 = vector.load %arg3[%c0_2, %c0_3] : memref<16x128xf32, #tpu.memory_space<vmem>>, vector<16x128xf32>
    %c0_4 = arith.constant 0 : index
    %c0_5 = arith.constant 0 : index
    %5 = vector.load %arg4[%c0_4, %c0_5] : memref<16x128xf32, #tpu.memory_space<vmem>>, vector<16x128xf32>
    %6 = arith.subf %3, %4 : vector<16x128xf32>
    %7 = arith.mulf %6, %6 : vector<16x128xf32>
    %8 = arith.mulf %7, %5 : vector<16x128xf32>
    %c1_i32 = arith.constant 1 : i32
    %9 = arith.muli %arg0, %c1_i32 : i32
    %10 = arith.addi %9, %arg1 : i32
    %c1_i32_6 = arith.constant 1 : i32
    %11 = arith.addi %10, %c1_i32_6 : i32
    %c16_i32 = arith.constant 16 : i32
    %12 = arith.muli %11, %c16_i32 : i32
    %c16_i32_7 = arith.constant 16 : i32
    %13 = arith.cmpi sgt, %12, %c16_i32_7 : i32
    %true = arith.constant true
    %14 = arith.xori %13, %true : i1
    %15 = arith.extui %14 : i1 to i32
    %c0_i32_8 = arith.constant 0 : i32
    %16 = arith.cmpi ne, %15, %c0_i32_8 : i32
    scf.if %16 {
      %c0_10 = arith.constant 0 : index
      %c0_11 = arith.constant 0 : index
      %c0_12 = arith.constant 0 : index
      %19 = vector.load %arg5[%c0_10, %c0_11, %c0_12] : memref<1x8x128xf32, #tpu.memory_space<vmem>>, vector<1x8x128xf32>
      %20 = vector.shape_cast %8 : vector<16x128xf32> to vector<1x2x8x128xf32>
      %cst = arith.constant dense<0.000000e+00> : vector<1x8x128xf32>
      %21 = vector.multi_reduction <add>, %20, %cst [1] : vector<1x2x8x128xf32> to vector<1x8x128xf32>
      %22 = arith.addf %19, %21 : vector<1x8x128xf32>
      %c0_13 = arith.constant 0 : index
      %c0_14 = arith.constant 0 : index
      %c0_15 = arith.constant 0 : index
      %23 = vector.load %arg5[%c0_13, %c0_14, %c0_15] : memref<1x8x128xf32, #tpu.memory_space<vmem>>, vector<1x8x128xf32>
      tpu.vector_store %arg5[%c0_13, %c0_14, %c0_15], %22 {strides = array<i32>} : memref<1x8x128xf32, #tpu.memory_space<vmem>>, vector<1x8x128xf32>,
      %c0_16 = arith.constant 0 : index
      %c0_17 = arith.constant 0 : index
      %c0_18 = arith.constant 0 : index
      %24 = vector.load %arg6[%c0_16, %c0_17, %c0_18] : memref<1x8x128xf32, #tpu.memory_space<vmem>>, vector<1x8x128xf32>
      %25 = vector.shape_cast %5 : vector<16x128xf32> to vector<1x2x8x128xf32>
      %cst_19 = arith.constant dense<0.000000e+00> : vector<1x8x128xf32>
      %26 = vector.multi_reduction <add>, %25, %cst_19 [1] : vector<1x2x8x128xf32> to vector<1x8x128xf32>
      %27 = arith.addf %24, %26 : vector<1x8x128xf32>
      %c0_20 = arith.constant 0 : index
      %c0_21 = arith.constant 0 : index
      %c0_22 = arith.constant 0 : index
      %28 = vector.load %arg6[%c0_20, %c0_21, %c0_22] : memref<1x8x128xf32, #tpu.memory_space<vmem>>, vector<1x8x128xf32>
      tpu.vector_store %arg6[%c0_20, %c0_21, %c0_22], %27 {strides = array<i32>} : memref<1x8x128xf32, #tpu.memory_space<vmem>>, vector<1x8x128xf32>,
    } else {
    }
    %17 = arith.extui %13 : i1 to i32
    %c0_i32_9 = arith.constant 0 : i32
    %18 = arith.cmpi ne, %17, %c0_i32_9 : i32
    scf.if %18 {
      %c16_i32_10 = arith.constant 16 : i32
      %19 = arith.muli %10, %c16_i32_10 : i32
      %20 = tpu.iota {dimensions = array<i32: 0>} : vector<16x128xi32>
      %21 = vector.broadcast %19 : i32 to vector<16x128xi32>
      %22 = arith.addi %21, %20 : vector<16x128xi32>
      %c16_i32_11 = arith.constant 16 : i32
      %23 = vector.broadcast %c16_i32_11 : i32 to vector<16x128xi32>
      %24 = arith.cmpi slt, %22, %23 : vector<16x128xi32>
      %c0_12 = arith.constant 0 : index
      %c0_13 = arith.constant 0 : index
      %c0_14 = arith.constant 0 : index
      %25 = vector.load %arg5[%c0_12, %c0_13, %c0_14] : memref<1x8x128xf32, #tpu.memory_space<vmem>>, vector<1x8x128xf32>
      %cst = arith.constant 0.000000e+00 : f32
      %26 = vector.broadcast %cst : f32 to vector<16x128xf32>
      %27 = arith.select %24, %8, %26 : vector<16x128xi1>, vector<16x128xf32>
      %28 = vector.shape_cast %27 : vector<16x128xf32> to vector<1x2x8x128xf32>
      %cst_15 = arith.constant dense<0.000000e+00> : vector<1x8x128xf32>
      %29 = vector.multi_reduction <add>, %28, %cst_15 [1] : vector<1x2x8x128xf32> to vector<1x8x128xf32>
      %30 = arith.addf %25, %29 : vector<1x8x128xf32>
      %c0_16 = arith.constant 0 : index
      %c0_17 = arith.constant 0 : index
      %c0_18 = arith.constant 0 : index
      %31 = vector.load %arg5[%c0_16, %c0_17, %c0_18] : memref<1x8x128xf32, #tpu.memory_space<vmem>>, vector<1x8x128xf32>
      tpu.vector_store %arg5[%c0_16, %c0_17, %c0_18], %30 {strides = array<i32>} : memref<1x8x128xf32, #tpu.memory_space<vmem>>, vector<1x8x128xf32>,
      %c0_19 = arith.constant 0 : index
      %c0_20 = arith.constant 0 : index
      %c0_21 = arith.constant 0 : index
      %32 = vector.load %arg6[%c0_19, %c0_20, %c0_21] : memref<1x8x128xf32, #tpu.memory_space<vmem>>, vector<1x8x128xf32>
      %cst_22 = arith.constant 0.000000e+00 : f32
      %33 = vector.broadcast %cst_22 : f32 to vector<16x128xf32>
      %34 = arith.select %24, %5, %33 : vector<16x128xi1>, vector<16x128xf32>
      %35 = vector.shape_cast %34 : vector<16x128xf32> to vector<1x2x8x128xf32>
      %cst_23 = arith.constant dense<0.000000e+00> : vector<1x8x128xf32>
      %36 = vector.multi_reduction <add>, %35, %cst_23 [1] : vector<1x2x8x128xf32> to vector<1x8x128xf32>
      %37 = arith.addf %32, %36 : vector<1x8x128xf32>
      %c0_24 = arith.constant 0 : index
      %c0_25 = arith.constant 0 : index
      %c0_26 = arith.constant 0 : index
      %38 = vector.load %arg6[%c0_24, %c0_25, %c0_26] : memref<1x8x128xf32, #tpu.memory_space<vmem>>, vector<1x8x128xf32>
      tpu.vector_store %arg6[%c0_24, %c0_25, %c0_26], %37 {strides = array<i32>} : memref<1x8x128xf32, #tpu.memory_space<vmem>>, vector<1x8x128xf32>,
    } else {
    }
    return
  }
  func.func @transform_0(%arg0: i32, %arg1: i32) -> (i32, i32) {
    %c1_i32 = arith.constant 1 : i32
    %0 = arith.muli %arg0, %c1_i32 : i32
    %1 = arith.addi %0, %arg1 : i32
    %c0_i32 = arith.constant 0 : i32
    %2 = arith.minsi %1, %c0_i32 : i32
    %c0_i32_0 = arith.constant 0 : i32
    %c0_i32_1 = arith.constant 0 : i32
    return %2, %c0_i32_0 : i32, i32
  }
  func.func @transform_1(%arg0: i32, %arg1: i32) -> (i32, i32) {
    %c1_i32 = arith.constant 1 : i32
    %0 = arith.muli %arg0, %c1_i32 : i32
    %1 = arith.addi %0, %arg1 : i32
    %c0_i32 = arith.constant 0 : i32
    %2 = arith.minsi %1, %c0_i32 : i32
    %c0_i32_0 = arith.constant 0 : i32
    %c0_i32_1 = arith.constant 0 : i32
    return %2, %c0_i32_0 : i32, i32
  }
  func.func @transform_2(%arg0: i32, %arg1: i32) -> (i32, i32) {
    %c1_i32 = arith.constant 1 : i32
    %0 = arith.muli %arg0, %c1_i32 : i32
    %1 = arith.addi %0, %arg1 : i32
    %c0_i32 = arith.constant 0 : i32
    %2 = arith.minsi %1, %c0_i32 : i32
    %c0_i32_0 = arith.constant 0 : i32
    %c0_i32_1 = arith.constant 0 : i32
    return %2, %c0_i32_0 : i32, i32
  }
  func.func @transform_3(%arg0: i32, %arg1: i32) -> (i32, i32, i32) {
    %c0_i32 = arith.constant 0 : i32
    %c0_i32_0 = arith.constant 0 : i32
    %c0_i32_1 = arith.constant 0 : i32
    return %arg0, %c0_i32, %c0_i32_0 : i32, i32, i32
  }
  func.func @transform_4(%arg0: i32, %arg1: i32) -> (i32, i32, i32) {
    %c0_i32 = arith.constant 0 : i32
    %c0_i32_0 = arith.constant 0 : i32
    %c0_i32_1 = arith.constant 0 : i32
    return %arg0, %c0_i32, %c0_i32_0 : i32, i32, i32
  }
}

</mosaic_0001>

<llo_original>
// kernel: tpu_custom_call.1
$region0: #{tpu_custom_call.1}
  #allocation0 [shape = 'u32[]', space=smem, size = 0x4, offset = 0x4, fixed_abs, tag = 'smem constant byte address 0x4 - core index']
  #allocation1 [shape = 'u32[144,128]{1,0:T(1,128)}', space=vmem, size = 0x12000, scoped, tag = 'internal scratch']
  %s0 = inlined_call_operand.hbm [shape: f32[16,128], index: 0, kind: input, shape index: {}]
  %s1 = inlined_call_operand.hbm [shape: f32[16,128], index: 1, kind: input, shape index: {}]
  %s2 = inlined_call_operand.hbm [shape: f32[16,128], index: 2, kind: input, shape index: {}]
  %s3 = inlined_call_operand.hbm [shape: f32[1,8,128], index: 3, kind: output, shape index: {0}]
  %s4 = inlined_call_operand.hbm [shape: f32[1,8,128], index: 4, kind: output, shape index: {1}]
  %5 = xla_tuple %s3, %s4
  %s6 = sld [smem:[#allocation0]]
  $region54: #{tpu_custom_call.1} parent=0
    _
  %s8 = ssub.s32 1, %s6
  %s9 = scalar_select 0, %s8, %s6
  $region1: #{tpu_custom_call.1} parent=0
    #allocation2 [shape = 'u8[8192]{0}', space=vmem, size = 0x2000, scoped, tag = 'input window, operand 0, single buffered']
    #allocation3 [shape = 's32[1]{0}', space=sflag, size = 0x4, scoped, tag = 'scoped memory for tpu_custom_call.1']
    #allocation4 [shape = 's32[1]{0}', space=sflag, size = 0x4, scoped, tag = 'scoped memory for tpu_custom_call.1']
    #allocation5 [shape = 'u8[8192]{0}', space=vmem, size = 0x2000, scoped, tag = 'input window, operand 1, single buffered']
    #allocation6 [shape = 's32[1]{0}', space=sflag, size = 0x4, scoped, tag = 'scoped memory for tpu_custom_call.1']
    #allocation7 [shape = 'u8[8192]{0}', space=vmem, size = 0x2000, scoped, tag = 'input window, operand 2, single buffered']
    #allocation8 [shape = 'u8[4096]{0}', space=vmem, size = 0x1000, scoped, tag = 'output window, operand 0, single buffered']
    #allocation9 [shape = 'u8[4096]{0}', space=vmem, size = 0x1000, scoped, tag = 'output window, operand 1, single buffered']
    #allocation10 [shape = 's32[1]{0}', space=sflag, size = 0x4, scoped, tag = 'scoped memory for tpu_custom_call.1']
    %10 = vsyncpa [#allocation3], 0
    %11 = vsyncpa [#allocation6], 0
    %12 = vsyncpa [#allocation4], 0
    %13 = vsyncpa [#allocation10], 0
    // Predicated region
    $region2: #{tpu_custom_call.1} parent=1 // pred_check
      _
    $region3: #{tpu_custom_call.1} parent=1 // pred_check_branch
      %15 = sbr.rel (0) target = $region5
    $region4: #{tpu_custom_call.1} parent=1 // pred_region
      %s16 = sadd.s32 0, 0
      %p17 = scmp.lt.s32.totalorder %s16, 0
      %s18 = scalar_select %p17, %s16, 0
      %s19 = smul.u32 2, %s18
      %s21 = ssub.s32 256, 256
      %22 = vsyncadd [#allocation3], %s21
      %s23 = smul.addr %s19, 128
      %s24 = scalar_lea.hbm %s0, %s23
      %s25 = sshll.u32 [#allocation2], 4
      %s26 = int_to_ptr.vmem [resolvable:$true] %s25
      %31 = dma.hbm_to_vmem [thread:$0]  %s24, 256, %s26, [#allocation3], 128, 128, 8
    $region5: #{tpu_custom_call.1} parent=1 // pred_fallthru
      _
    // Predicated region
    $region6: #{tpu_custom_call.1} parent=1 // pred_check
      _
    $region7: #{tpu_custom_call.1} parent=1 // pred_check_branch
      %33 = sbr.rel (0) target = $region9
    $region8: #{tpu_custom_call.1} parent=1 // pred_region
      %s34 = sadd.s32 0, 0
      %p35 = scmp.lt.s32.totalorder %s34, 0
      %s36 = scalar_select %p35, %s34, 0
      %s37 = smul.u32 2, %s36
      %s39 = ssub.s32 256, 256
      %40 = vsyncadd [#allocation6], %s39
      %s41 = smul.addr %s37, 128
      %s42 = scalar_lea.hbm %s1, %s41
      %s43 = sshll.u32 [#allocation5], 4
      %s44 = int_to_ptr.vmem [resolvable:$true] %s43
      %49 = dma.hbm_to_vmem [thread:$0]  %s42, 256, %s44, [#allocation6], 128, 128, 8
    $region9: #{tpu_custom_call.1} parent=1 // pred_fallthru
      _
    // Predicated region
    $region10: #{tpu_custom_call.1} parent=1 // pred_check
      _
    $region11: #{tpu_custom_call.1} parent=1 // pred_check_branch
      %51 = sbr.rel (0) target = $region13
    $region12: #{tpu_custom_call.1} parent=1 // pred_region
      %s52 = sadd.s32 0, 0
      %p53 = scmp.lt.s32.totalorder %s52, 0
      %s54 = scalar_select %p53, %s52, 0
      %s55 = smul.u32 2, %s54
      %s57 = ssub.s32 256, 256
      %58 = vsyncadd [#allocation6], %s57
      %s59 = smul.addr %s55, 128
      %s60 = scalar_lea.hbm %s2, %s59
      %s61 = sshll.u32 [#allocation7], 4
      %s62 = int_to_ptr.vmem [resolvable:$true] %s61
      %67 = dma.hbm_to_vmem [thread:$0]  %s60, 256, %s62, [#allocation6], 128, 128, 8
    $region13: #{tpu_custom_call.1} parent=1 // pred_fallthru
      _
    // Predicated region
    $region14: #{tpu_custom_call.1} parent=1 // pred_check
      _
    $region15: #{tpu_custom_call.1} parent=1 // pred_check_branch
      %69 = sbr.rel (0) target = $region17
    $region16: #{tpu_custom_call.1} parent=1 // pred_region
      %70 = dma.done [#allocation3], 256
    $region17: #{tpu_custom_call.1} parent=1 // pred_fallthru
      _
    // Predicated region
    $region18: #{tpu_custom_call.1} parent=1 // pred_check
      _
    $region19: #{tpu_custom_call.1} parent=1 // pred_check_branch
      %72 = sbr.rel (0) target = $region21
    $region20: #{tpu_custom_call.1} parent=1 // pred_region
      %73 = dma.done [#allocation6], 256
    $region21: #{tpu_custom_call.1} parent=1 // pred_fallthru
      _
    // Predicated region
    $region22: #{tpu_custom_call.1} parent=1 // pred_check
      _
    $region23: #{tpu_custom_call.1} parent=1 // pred_check_branch
      %75 = sbr.rel (0) target = $region25
    $region24: #{tpu_custom_call.1} parent=1 // pred_region
      %76 = dma.done [#allocation6], 256
    $region25: #{tpu_custom_call.1} parent=1 // pred_fallthru
      _
    %s77 = sadd.s32 0, 0
    %p78 = scmp.lt.s32.totalorder %s77, 0
    %s79 = scalar_select %p78, %s77, 0
    %s80 = smul.u32 2, %s79
    %s81 = sadd.s32 0, 0
    %p82 = scmp.lt.s32.totalorder %s81, 0
    %s83 = scalar_select %p82, %s81, 0
    %s84 = smul.u32 2, %s83
    %s85 = sadd.s32 0, 0
    %p86 = scmp.lt.s32.totalorder %s85, 0
    %s87 = scalar_select %p86, %s85, 0
    %s88 = smul.u32 2, %s87
    %p89 = scmp.eq.s32.totalorder 0, 0
    // Predicated region
    $region26: #{tpu_custom_call.1} parent=1 // pred_check
      %p90 = pneg %p89
    $region27: #{tpu_custom_call.1} parent=1 // pred_check_branch
      %92 = sbr.rel (%p90) target = $region29
    $region28: #{tpu_custom_call.1} parent=1 // pred_region
      %93 = vst [vmem:[#allocation8] sm:$0xff] 0.0
      %94 = vst [vmem:[#allocation9] sm:$0xff] 0.0
    $region29: #{tpu_custom_call.1} parent=1 // pred_fallthru
      _
    %v95 = vld [vmem:[#allocation2] sm:$0xff]
    %v96 = vld [vmem:[#allocation2 + $0x8] sm:$0xff]
    %v97 = vld [vmem:[#allocation5] sm:$0xff]
    %v98 = vld [vmem:[#allocation5 + $0x8] sm:$0xff]
    %v99 = vld [vmem:[#allocation7] sm:$0xff]
    %v100 = vld [vmem:[#allocation7 + $0x8] sm:$0xff]
    %v101 = vsub.f32 %v95, %v97
    %v102 = vsub.f32 %v96, %v98
    %v103 = vmul.f32 %v101, %v101
    %v104 = vmul.f32 %v102, %v102
    %v105 = vmul.f32 %v103, %v99
    %v106 = vmul.f32 %v104, %v100
    %s107 = sadd.s32 0, 0
    %s108 = sadd.s32 %s107, 1
    %s109 = smul.u32 %s108, 16
    %p110 = scmp.gt.s32.totalorder %s109, 16
    %p111 = scmp.le.s32.totalorder %s109, 16
    // Predicated region
    $region30: #{tpu_custom_call.1} parent=1 // pred_check
      %p112 = pneg %p111
    $region31: #{tpu_custom_call.1} parent=1 // pred_check_branch
      %114 = sbr.rel (%p112) target = $region33
    $region32: #{tpu_custom_call.1} parent=1 // pred_region
      %v115 = vld [vmem:[#allocation8] sm:$0xff]
      %v116 = vadd.f32 %v105, %v106
      %v117 = vadd.f32 %v115, %v116
      %118 = vst [vmem:[#allocation8] sm:$0xff] %v117
      %v119 = vld [vmem:[#allocation9] sm:$0xff]
      %v120 = vadd.f32 %v99, %v100
      %v121 = vadd.f32 %v119, %v120
      %122 = vst [vmem:[#allocation9] sm:$0xff] %v121
    $region33: #{tpu_custom_call.1} parent=1 // pred_fallthru
      _
    // Predicated region
    $region34: #{tpu_custom_call.1} parent=1 // pred_check
      %p123 = pneg %p110
    $region35: #{tpu_custom_call.1} parent=1 // pred_check_branch
      %125 = sbr.rel (%p123) target = $region37
    $region36: #{tpu_custom_call.1} parent=1 // pred_region
      %s126 = smul.u32 %s107, 16
      %v127 = vlaneseq
      %v128 = vshrl.u32 %v127, 7
      %v129 = vadd.s32 %v128, 8
      %v130 = vstv %s126
      %v131 = vadd.s32 %v130, %v128
      %v132 = vadd.s32 %v130, %v129
      %vm133 = vcmp.lt.s32.totalorder %v131, 16
      %vm134 = vcmp.lt.s32.totalorder %v132, 16
      %v135 = vld [vmem:[#allocation8] sm:$0xff]
      %v136 = vsel %vm133, %v105, 0.0
      %v137 = vsel %vm134, %v106, 0.0
      %v138 = vadd.f32 %v136, %v137
      %v139 = vadd.f32 %v135, %v138
      %140 = vst [vmem:[#allocation8] sm:$0xff] %v139
      %v141 = vld [vmem:[#allocation9] sm:$0xff]
      %v142 = vsel %vm133, %v99, 0.0
      %v143 = vsel %vm134, %v100, 0.0
      %v144 = vadd.f32 %v142, %v143
      %v145 = vadd.f32 %v141, %v144
      %146 = vst [vmem:[#allocation9] sm:$0xff] %v145
    $region37: #{tpu_custom_call.1} parent=1 // pred_fallthru
      _
    // Predicated region
    $region38: #{tpu_custom_call.1} parent=1 // pred_check
      _
    $region39: #{tpu_custom_call.1} parent=1 // pred_check_branch
      %148 = sbr.rel (0) target = $region41
    $region40: #{tpu_custom_call.1} parent=1 // pred_region
      %s150 = ssub.s32 128, 128
      %151 = vsyncadd [#allocation4], %s150
      %s153 = sshll.u32 [#allocation8], 4
      %s154 = int_to_ptr.vmem [resolvable:$true] %s153
      %156 = dma.vmem_to_hbm [thread:$0]  %s154, 128, %s3, [#allocation4]
    $region41: #{tpu_custom_call.1} parent=1 // pred_fallthru
      _
    // Predicated region
    $region42: #{tpu_custom_call.1} parent=1 // pred_check
      _
    $region43: #{tpu_custom_call.1} parent=1 // pred_check_branch
      %158 = sbr.rel (0) target = $region45
    $region44: #{tpu_custom_call.1} parent=1 // pred_region
      %s160 = ssub.s32 128, 128
      %161 = vsyncadd [#allocation10], %s160
      %s163 = sshll.u32 [#allocation9], 4
      %s164 = int_to_ptr.vmem [resolvable:$true] %s163
      %166 = dma.vmem_to_hbm [thread:$0]  %s164, 128, %s4, [#allocation10]
    $region45: #{tpu_custom_call.1} parent=1 // pred_fallthru
      _
    // Predicated region
    $region46: #{tpu_custom_call.1} parent=1 // pred_check
      _
    $region47: #{tpu_custom_call.1} parent=1 // pred_check_branch
      %168 = sbr.rel (0) target = $region49
    $region48: #{tpu_custom_call.1} parent=1 // pred_region
      %169 = dma.done [#allocation4], 128
    $region49: #{tpu_custom_call.1} parent=1 // pred_fallthru
      _
    // Predicated region
    $region50: #{tpu_custom_call.1} parent=1 // pred_check
      _
    $region51: #{tpu_custom_call.1} parent=1 // pred_check_branch
      %171 = sbr.rel (0) target = $region53
    $region52: #{tpu_custom_call.1} parent=1 // pred_region
      %172 = dma.done [#allocation10], 128
    $region53: #{tpu_custom_call.1} parent=1 // pred_fallthru
      _
    %173 = vsyncpa [#allocation3], 1
    %174 = vsyncpa [#allocation6], 1
    %175 = vsyncpa [#allocation4], 1
    %176 = vsyncpa [#allocation10], 1

</llo_original>
